<compile_context>
chip_gen: v7x
topology: tpu7x:2x2x1
jax: 0.10.0
libtpu: 0.0.40
codegen_flags: <defaults>
</compile_context>

<pallas_src>
import math
from functools import partial

import jax
import jax.numpy as jnp
import numpy as np
from jax.experimental import pallas as pl
from jax.experimental.pallas import tpu as pltpu


def _round_up(x: int, m: int) -> int:
    return ((x + m - 1) // m) * m


def _make_fcnet_kernel(num_layers: int):
    """Fused kernel body for `num_layers` (weight-norm Linear + ReLU)."""

    def kernel(x_ref, *refs):
        # refs = (w_0, b_0, w_1, b_1, ..., w_{L-1}, b_{L-1}, o_ref)
        o_ref = refs[-1]
        h = x_ref[...]                                   # (TILE_M, K0_pad) f32
        for l in range(num_layers):                      # unrolled at trace time
            w = refs[2 * l][...]                         # (K_pad, N_pad), scale pre-folded
            b = refs[2 * l + 1][...]                     # (1, N_pad) f32
            # Only the activation is cast; weights are already in MXU dtype.
            y = jnp.dot(h.astype(w.dtype), w,
                        preferred_element_type=jnp.float32)     # MXU, f32 acc
            h = jnp.maximum(y + b, 0.0)                  # f32 epilogue: bias + ReLU
        o_ref[...] = h.astype(o_ref.dtype)

    return kernel


def _vmem_capacity_bytes() -> int:
    """Physical VMEM of the current chip; conservative fallback = v7x (64 MiB)."""
    try:
        return int(pltpu.get_tpu_info().vmem_capacity_bytes)
    except Exception:
        return 64 << 20


@partial(jax.jit, static_argnames=("out_dim", "tile_m_max"))
def fcnet_forward(weights, biases, x, *, out_dim, tile_m_max=1024):
    """FCNet forward with packed params.

    weights: tuple of (K_pad, N_pad), pre-transposed, zero-padded, weight-norm
             scale folded in, stored at the matmul dtype (bf16 by default).
    biases:  tuple of (1, N_pad) f32.
    x:       (B, S, dims[0]) f32.
    Returns  (B, S, out_dim) in x.dtype.
    """
    B, S, k_in = x.shape
    M = B * S
    num_layers = len(weights)
    k0_pad = weights[0].shape[0]
    n_last_pad = weights[-1].shape[1]

    # --- VMEM budget (generation aware) ------------------------------------
    vmem_cap = (_vmem_capacity_bytes() * 3) // 4          # ~96 MiB v5e/v6e, ~48 MiB v7x
    wb_bytes = sum(w.size * w.dtype.itemsize + b.size * b.dtype.itemsize
                   for w, b in zip(weights, biases))      # single-buffered (Buffered(1))
    if wb_bytes > vmem_cap:
        raise ValueError(
            f"Packed weight stack ({wb_bytes} B) exceeds the VMEM budget "
            f"({vmem_cap} B); split the stack or tile the widest layer's N.")

    def vmem_estimate(tm):
        max_w = max([k0_pad] + [w.shape[1] for w in weights])
        io = 2 * tm * (k0_pad + n_last_pad) * x.dtype.itemsize   # double-buffered x/out tiles
        act = 6 * 4 * tm * max_w                                 # f32 intermediates + bf16 temps
        return io + act + wb_bytes

    # --- M tiling ------------------------------------------------------------
    itemsize = weights[0].dtype.itemsize
    row_align = max(8, 32 // itemsize)          # 8 (f32) / 16 (bf16) / 32 (int8/fp8)
    tile_m = _round_up(min(tile_m_max, M), row_align)
    # Ensure >= 2 grid steps when M allows it (v7x megacore; harmless on 1-TC chips).
    if _round_up(M, tile_m) // tile_m < 2 and M >= 2 * row_align:
        tile_m = _round_up(-(-M // 2), row_align)
    # VMEM-fit guard.
    while vmem_estimate(tile_m) > vmem_cap and tile_m > row_align:
        tile_m = max(row_align, _round_up(tile_m // 2, row_align))

    m_pad = _round_up(M, tile_m)
    grid = (m_pad // tile_m,)
    vmem_limit = int(min(max(int(1.25 * vmem_estimate(tile_m)), 16 << 20), vmem_cap))

    # --- Input prep (skip the pad copy when shapes already line up) ----------
    x2d = x.reshape(M, k_in)
    if (m_pad != M) or (k0_pad != k_in):
        x2d = jnp.pad(x2d, ((0, m_pad - M), (0, k0_pad - k_in)))

    # --- Specs ----------------------------------------------------------------
    in_specs = [pl.BlockSpec((tile_m, k0_pad), lambda i: (i, 0))]   # activations, tiled on M
    for w, b in zip(weights, biases):
        kp, npad = w.shape
        # Constant index_map across the grid => never re-fetched; single-buffer
        # to halve their resident VMEM.
        in_specs.append(pl.BlockSpec((kp, npad), lambda i: (0, 0),
                                     pipeline_mode=pl.Buffered(1)))
        in_specs.append(pl.BlockSpec((1, npad), lambda i: (0, 0),
                                     pipeline_mode=pl.Buffered(1)))
    out_specs = pl.BlockSpec((tile_m, n_last_pad), lambda i: (i, 0))

    flat_params = []
    for w, b in zip(weights, biases):
        flat_params += [w, b]

    out_pad = pl.pallas_call(
        _make_fcnet_kernel(num_layers),
        out_shape=jax.ShapeDtypeStruct((m_pad, n_last_pad), x.dtype),
        grid_spec=pltpu.PrefetchScalarGridSpec(
            num_scalar_prefetch=0,
            grid=grid,
            in_specs=in_specs,
            out_specs=out_specs,
        ),
        compiler_params=pltpu.CompilerParams(
            dimension_semantics=("parallel",),
            vmem_limit_bytes=vmem_limit,
        ),
    )(x2d, *flat_params)

    return out_pad[:M, :out_dim].reshape(B, S, out_dim)


def init_fcnet_params(key, dims):
    """Raw PyTorch-style params: per layer V (out,in), bias (out,), gain g.

    weight_norm(dim=None) initializes g = ||V||_F, so W_eff == V at init.
    """
    params = []
    for i in range(len(dims) - 1):
        in_dim, out_dim = dims[i], dims[i + 1]
        key, k_w, k_b = jax.random.split(key, 3)
        bound = 1.0 / math.sqrt(in_dim)
        v = jax.random.uniform(k_w, (out_dim, in_dim), jnp.float32, -bound, bound)
        b = jax.random.uniform(k_b, (out_dim,), jnp.float32, -bound, bound)
        g = jnp.sqrt(jnp.sum(v * v))
        params.append((v, b, g))
    return params


def pack_fcnet_params(params, param_dtype=jnp.bfloat16):
    """One-time packing (NOT in the per-forward hot path).

    * Transpose V -> (K, N) and fold in the weight-norm scale g/||V||_F.
    * Zero-pad hidden/output dims to multiples of 128 (lane dense); pad the
      input dim only to the sublane quantum of `param_dtype` (no 8x x-DMA
      inflation for small k_in).
    * Store weights at `param_dtype` (bf16 => MXU-native, half the DMA bytes);
      biases stay f32 (tiny, added exactly in the f32 epilogue).
    """
    dims = [params[0][0].shape[1]] + [v.shape[0] for (v, _, _) in params]
    itemsize = jnp.dtype(param_dtype).itemsize
    sub = max(8, 32 // itemsize)                    # 8 f32 / 16 bf16 / 32 int8
    dims_pad = [_round_up(dims[0], sub)] + [_round_up(d, 128) for d in dims[1:]]

    weights, biases = [], []
    for l, (v, b, g) in enumerate(params):
        kp, npad = dims_pad[l], dims_pad[l + 1]
        out_dim, in_dim = v.shape
        s = g / jnp.sqrt(jnp.sum(v.astype(jnp.float32) ** 2))   # weight-norm scale
        wt = jnp.zeros((kp, npad), jnp.float32).at[:in_dim, :out_dim].set(s * v.T)
        weights.append(wt.astype(param_dtype))
        biases.append(jnp.zeros((1, npad), jnp.float32).at[0, :out_dim].set(b))
    return tuple(weights), tuple(biases)


def fcnet_reference(params, x, matmul_dtype=None):
    """Pure-JAX reference of FCNet(dims, act='ReLU', dropout=0).forward.

    If matmul_dtype is given, emulates the kernel's low-precision matmul path
    (weights and layer inputs cast, f32 accumulation)."""
    h = x
    for (v, b, g) in params:
        w_eff = v * (g / jnp.sqrt(jnp.sum(v * v)))
        h_in = h
        if matmul_dtype is not None:
            w_eff = w_eff.astype(matmul_dtype)
            h_in = h.astype(matmul_dtype)
        y = jnp.einsum("bsk,nk->bsn", h_in, w_eff,
                       preferred_element_type=jnp.float32)
        h = jnp.maximum(y + b, 0.0)
    return h.astype(x.dtype)


if __name__ == "__main__":
    # FCNet(dims=[16, 32, 32], act='ReLU', dropout=0): two weight-normalized
    # Linear + ReLU layers, input [B, S, 16] -> output [B, S, 32].
    dims = [16, 32, 32]
    B, S = 2, 8

    key = jax.random.PRNGKey(0)
    key, k_x = jax.random.split(key)
    x = jax.random.normal(k_x, (B, S, dims[0]), jnp.float32)

    params = init_fcnet_params(key, dims)
    weights, biases = pack_fcnet_params(params)            # bf16-packed, scale folded

    out = fcnet_forward(weights, biases, x, out_dim=dims[-1])
    out = jax.block_until_ready(out)

    # Tight check against a reference that emulates the bf16 matmul path ...
    ref_bf16 = fcnet_reference(params, x, matmul_dtype=jnp.bfloat16)
    np.testing.assert_allclose(np.asarray(out), np.asarray(ref_bf16),
                               rtol=5e-3, atol=5e-3)
    # ... and a loose sanity check against the exact f32 reference.
    ref_f32 = fcnet_reference(params, x)
    np.testing.assert_allclose(np.asarray(out), np.asarray(ref_f32),
                               rtol=3e-2, atol=3e-2)

    print("KERNEL_OK")
</pallas_src>

<mosaic_0001>
module attributes {stable_mosaic.version = 11 : i64} {
  func.func @kernel(%arg0: i32, %arg1: memref<16x16xf32, #tpu.memory_space<vmem>>, %arg2: memref<16x128xbf16, #tpu.memory_space<vmem>>, %arg3: memref<1x128xf32, #tpu.memory_space<vmem>>, %arg4: memref<128x128xbf16, #tpu.memory_space<vmem>>, %arg5: memref<1x128xf32, #tpu.memory_space<vmem>>, %arg6: memref<16x128xf32, #tpu.memory_space<vmem>>) attributes {dimension_semantics = [#tpu.dimension_semantics<parallel>], iteration_bounds = array<i64: 1>, scalar_prefetch = 0 : i64, scratch_operands = 0 : i64, tpu.core_type = #tpu.core_type<tc>, window_params = [{transform_indices = @transform_0, window_bounds = array<i64: 16, 16>}, {pipeline_mode = #tpu.pipeline_mode<synchronous>, transform_indices = @transform_1, window_bounds = array<i64: 16, 128>}, {pipeline_mode = #tpu.pipeline_mode<synchronous>, transform_indices = @transform_2, window_bounds = array<i64: 1, 128>}, {pipeline_mode = #tpu.pipeline_mode<synchronous>, transform_indices = @transform_3, window_bounds = array<i64: 128, 128>}, {pipeline_mode = #tpu.pipeline_mode<synchronous>, transform_indices = @transform_4, window_bounds = array<i64: 1, 128>}, {transform_indices = @transform_5, window_bounds = array<i64: 16, 128>}]} {
    %c0 = arith.constant 0 : index
    %c0_0 = arith.constant 0 : index
    %0 = vector.load %arg1[%c0, %c0_0] : memref<16x16xf32, #tpu.memory_space<vmem>>, vector<16x16xf32>
    %c0_1 = arith.constant 0 : index
    %c0_2 = arith.constant 0 : index
    %1 = vector.load %arg2[%c0_1, %c0_2] : memref<16x128xbf16, #tpu.memory_space<vmem>>, vector<16x128xbf16>
    %c0_3 = arith.constant 0 : index
    %c0_4 = arith.constant 0 : index
    %2 = vector.load %arg3[%c0_3, %c0_4] : memref<1x128xf32, #tpu.memory_space<vmem>>, vector<1x128xf32>
    %3 = arith.truncf %0 : vector<16x16xf32> to vector<16x16xbf16>
    %cst = arith.constant dense<0.000000e+00> : vector<16x128xf32>
    %4 = tpu.matmul %3, %1, %cst {dimension_numbers = #tpu.dot_dimension_numbers<[1], [0], [0], [1], [0, 0, 1, 1], [], []>} : vector<16x16xbf16>, vector<16x128xbf16>, vector<16x128xf32> -> vector<16x128xf32>
    %5 = vector.broadcast %2 : vector<1x128xf32> to vector<16x128xf32>
    %6 = arith.addf %4, %5 : vector<16x128xf32>
    %cst_5 = arith.constant 0.000000e+00 : f32
    %7 = vector.broadcast %cst_5 : f32 to vector<16x128xf32>
    %8 = arith.maximumf %6, %7 : vector<16x128xf32>
    %c0_6 = arith.constant 0 : index
    %c0_7 = arith.constant 0 : index
    %9 = vector.load %arg4[%c0_6, %c0_7] : memref<128x128xbf16, #tpu.memory_space<vmem>>, vector<128x128xbf16>
    %c0_8 = arith.constant 0 : index
    %c0_9 = arith.constant 0 : index
    %10 = vector.load %arg5[%c0_8, %c0_9] : memref<1x128xf32, #tpu.memory_space<vmem>>, vector<1x128xf32>
    %11 = arith.truncf %8 : vector<16x128xf32> to vector<16x128xbf16>
    %cst_10 = arith.constant dense<0.000000e+00> : vector<16x128xf32>
    %12 = tpu.matmul %11, %9, %cst_10 {dimension_numbers = #tpu.dot_dimension_numbers<[1], [0], [0], [1], [0, 0, 1, 1], [], []>} : vector<16x128xbf16>, vector<128x128xbf16>, vector<16x128xf32> -> vector<16x128xf32>
    %13 = vector.broadcast %10 : vector<1x128xf32> to vector<16x128xf32>
    %14 = arith.addf %12, %13 : vector<16x128xf32>
    %cst_11 = arith.constant 0.000000e+00 : f32
    %15 = vector.broadcast %cst_11 : f32 to vector<16x128xf32>
    %16 = arith.maximumf %14, %15 : vector<16x128xf32>
    %c0_12 = arith.constant 0 : index
    %c0_13 = arith.constant 0 : index
    %17 = vector.load %arg6[%c0_12, %c0_13] : memref<16x128xf32, #tpu.memory_space<vmem>>, vector<16x128xf32>
    tpu.vector_store %arg6[%c0_12, %c0_13], %16 {strides = array<i32>} : memref<16x128xf32, #tpu.memory_space<vmem>>, vector<16x128xf32>,
    return
  }
  func.func @transform_0(%arg0: i32) -> (i32, i32) {
    %c0_i32 = arith.constant 0 : i32
    %c0_i32_0 = arith.constant 0 : i32
    return %arg0, %c0_i32 : i32, i32
  }
  func.func @transform_1(%arg0: i32) -> (i32, i32) {
    %c0_i32 = arith.constant 0 : i32
    %c0_i32_0 = arith.constant 0 : i32
    %c0_i32_1 = arith.constant 0 : i32
    return %c0_i32, %c0_i32_0 : i32, i32
  }
  func.func @transform_2(%arg0: i32) -> (i32, i32) {
    %c0_i32 = arith.constant 0 : i32
    %c0_i32_0 = arith.constant 0 : i32
    %c0_i32_1 = arith.constant 0 : i32
    return %c0_i32, %c0_i32_0 : i32, i32
  }
  func.func @transform_3(%arg0: i32) -> (i32, i32) {
    %c0_i32 = arith.constant 0 : i32
    %c0_i32_0 = arith.constant 0 : i32
    %c0_i32_1 = arith.constant 0 : i32
    return %c0_i32, %c0_i32_0 : i32, i32
  }
  func.func @transform_4(%arg0: i32) -> (i32, i32) {
    %c0_i32 = arith.constant 0 : i32
    %c0_i32_0 = arith.constant 0 : i32
    %c0_i32_1 = arith.constant 0 : i32
    return %c0_i32, %c0_i32_0 : i32, i32
  }
  func.func @transform_5(%arg0: i32) -> (i32, i32) {
    %c0_i32 = arith.constant 0 : i32
    %c0_i32_0 = arith.constant 0 : i32
    return %arg0, %c0_i32 : i32, i32
  }
}

</mosaic_0001>

<llo_original>
// kernel: fcnet_forward.1
$region0: #{fcnet_forward.1}
  #allocation0 [shape = 'u32[]', space=smem, size = 0x4, offset = 0x4, fixed_abs, tag = 'smem constant byte address 0x4 - core index']
  #allocation1 [shape = 'u32[144,128]{1,0:T(1,128)}', space=vmem, size = 0x12000, scoped, tag = 'internal scratch']
  %s0 = inlined_call_operand.vmem [shape: f32[16,16], index: 0, kind: input, shape index: {}]
  %s1 = inlined_call_operand.hbm [shape: bf16[16,128], index: 1, kind: input, shape index: {}]
  %s2 = inlined_call_operand.vmem [shape: f32[1,128], index: 2, kind: input, shape index: {}]
  %s3 = inlined_call_operand.hbm [shape: bf16[128,128], index: 3, kind: input, shape index: {}]
  %s4 = inlined_call_operand.vmem [shape: f32[1,128], index: 4, kind: input, shape index: {}]
  %s5 = inlined_call_operand.vmem [shape: f32[16,128], index: 5, kind: output, shape index: {}]
  %s6 = sld [smem:[#allocation0]]
  $region38: #{fcnet_forward.1} parent=0
    _
  %s8 = ssub.s32 1, %s6
  %s9 = scalar_select 0, %s8, %s6
  $region1: #{fcnet_forward.1} parent=0
    #allocation2 [shape = 'u8[4096]{0}', space=vmem, size = 0x1000, scoped, tag = 'input window, operand 1, single buffered']
    #allocation3 [shape = 's32[1]{0}', space=sflag, size = 0x4, scoped, tag = 'scoped memory for fcnet_forward.1']
    #allocation4 [shape = 'u8[32768]{0}', space=vmem, size = 0x8000, scoped, tag = 'input window, operand 3, single buffered']
    #allocation5 [shape = 's32[1]{0}', space=sflag, size = 0x4, scoped, tag = 'scoped memory for fcnet_forward.1']
    %10 = vsyncpa [#allocation3], 0
    %11 = vsyncpa [#allocation5], 0
    // Predicated region
    $region2: #{fcnet_forward.1} parent=1 // pred_check
      _
    $region3: #{fcnet_forward.1} parent=1 // pred_check_branch
      %13 = sbr.rel (0) target = $region5
    $region4: #{fcnet_forward.1} parent=1 // pred_region
      _
    $region5: #{fcnet_forward.1} parent=1 // pred_fallthru
      _
    // Predicated region
    $region6: #{fcnet_forward.1} parent=1 // pred_check
      _
    $region7: #{fcnet_forward.1} parent=1 // pred_check_branch
      %15 = sbr.rel (0) target = $region9
    $region8: #{fcnet_forward.1} parent=1 // pred_region
      %s17 = ssub.s32 128, 128
      %18 = vsyncadd [#allocation3], %s17
      %s19 = sshll.u32 [#allocation2], 4
      %s20 = int_to_ptr.vmem [resolvable:$true] %s19
      %25 = dma.hbm_to_vmem [thread:$0]  %s1, 128, %s20, [#allocation3], 64, 64, 4
    $region9: #{fcnet_forward.1} parent=1 // pred_fallthru
      _
    // Predicated region
    $region10: #{fcnet_forward.1} parent=1 // pred_check
      _
    $region11: #{fcnet_forward.1} parent=1 // pred_check_branch
      %27 = sbr.rel (0) target = $region13
    $region12: #{fcnet_forward.1} parent=1 // pred_region
      _
    $region13: #{fcnet_forward.1} parent=1 // pred_fallthru
      _
    // Predicated region
    $region14: #{fcnet_forward.1} parent=1 // pred_check
      _
    $region15: #{fcnet_forward.1} parent=1 // pred_check_branch
      %29 = sbr.rel (0) target = $region17
    $region16: #{fcnet_forward.1} parent=1 // pred_region
      %s31 = ssub.s32 1024, 1024
      %32 = vsyncadd [#allocation5], %s31
      %s33 = sshll.u32 [#allocation4], 4
      %s34 = int_to_ptr.vmem [resolvable:$true] %s33
      %39 = dma.hbm_to_vmem [thread:$0]  %s3, 1024, %s34, [#allocation5], 64, 64, 4
    $region17: #{fcnet_forward.1} parent=1 // pred_fallthru
      _
    // Predicated region
    $region18: #{fcnet_forward.1} parent=1 // pred_check
      _
    $region19: #{fcnet_forward.1} parent=1 // pred_check_branch
      %41 = sbr.rel (0) target = $region21
    $region20: #{fcnet_forward.1} parent=1 // pred_region
      _
    $region21: #{fcnet_forward.1} parent=1 // pred_fallthru
      _
    // Predicated region
    $region22: #{fcnet_forward.1} parent=1 // pred_check
      _
    $region23: #{fcnet_forward.1} parent=1 // pred_check_branch
      %43 = sbr.rel (0) target = $region25
    $region24: #{fcnet_forward.1} parent=1 // pred_region
      %44 = dma.done [#allocation3], 128
    $region25: #{fcnet_forward.1} parent=1 // pred_fallthru
      _
    // Predicated region
    $region26: #{fcnet_forward.1} parent=1 // pred_check
      _
    $region27: #{fcnet_forward.1} parent=1 // pred_check_branch
      %46 = sbr.rel (0) target = $region29
    $region28: #{fcnet_forward.1} parent=1 // pred_region
      %47 = dma.done [#allocation5], 1024
    $region29: #{fcnet_forward.1} parent=1 // pred_fallthru
      _
    %v49 = vld [vmem:[%s0] sm:$0xff]
    %v50 = vld [vmem:[%s0 + $0x8] sm:$0xff]
    %v51 = vld [vmem:[#allocation2] sm:$0xf]
    %v52 = vld [vmem:[#allocation2 + $0x4] sm:$0xf]
    %v53 = vld [vmem:[%s2] sm:$0x1]
    %v54 = vpack.c.bf16 %v50, %v49
    %v56 = vlaneseq
    %v57 = vshrl.u32 %v56, 7
    %v58 = vsub.s32 0, %v57
    %v59 = vrot.slane %v53, %v58
    %v63 = vunpack.c.l.b16 %v51
    %v64 = vunpack.c.l.b16 %v52
    %v65 = vpack.c.b16 %v64, %v63
    %vm67 = vcmask 130048
    %v69 = vsel %vm67, %v54, 0
    %71 = vmatprep.subr.bf16.mxu0 0
    %72 = vmatpush1.bf16.msra.mxu0 %v65
    %73 = vmatprep.subr.bf16.mxu0 0
    %74 = vmatpush1.bf16.msra.mxu0 0
    %75 = vmatprep.subr.bf16.mxu0 0
    %76 = vmatpush1.bf16.msra.mxu0 0
    %77 = vmatprep.subr.bf16.mxu0 0
    %78 = vmatpush1.bf16.msra.mxu0 0
    %79 = vmatprep.subr.bf16.mxu0 0
    %80 = vmatpush1.bf16.msra.mxu0 0
    %81 = vmatprep.subr.bf16.mxu0 0
    %82 = vmatpush1.bf16.msra.mxu0 0
    %83 = vmatprep.subr.bf16.mxu0 0
    %84 = vmatpush1.bf16.msra.mxu0 0
    %85 = vmatprep.subr.bf16.mxu0 0
    %86 = vmatpush1.bf16.msra.mxu0 0
    %87 = vmatprep.subr.bf16.mxu0 0
    %88 = vmatpush1.bf16.msra.mxu0 0
    %89 = vmatprep.subr.bf16.mxu0 0
    %90 = vmatpush1.bf16.msra.mxu0 0
    %91 = vmatprep.subr.bf16.mxu0 0
    %92 = vmatpush1.bf16.msra.mxu0 0
    %93 = vmatprep.subr.bf16.mxu0 0
    %94 = vmatpush1.bf16.msra.mxu0 0
    %95 = vmatprep.subr.bf16.mxu0 0
    %96 = vmatpush1.bf16.msra.mxu0 0
    %97 = vmatprep.subr.bf16.mxu0 0
    %98 = vmatpush1.bf16.msra.mxu0 0
    %99 = vmatprep.subr.bf16.mxu0 0
    %100 = vmatpush1.bf16.msra.mxu0 0
    %101 = vmatprep.subr.bf16.mxu0 0
    %102 = vmatpush1.bf16.msra.mxu0 0
    %103 = vmatprep.mubr.bf16.mxu0 0
    %104 = vmatmul.mubr.bf16.gmra.mrb[0].mxu0 %v69
    %v105 = vpop.f32.mrb[0].mxu0
    %v106 = vadd.f32 %v59, %v105
    %v107 = vpop.f32.mrb[0].mxu0
    %v108 = vpop.f32.mrb[0].mxu0
    %v109 = vadd.f32 %v59, %v108
    %v110 = vpop.f32.mrb[0].mxu0
    %111 = vdwg.mxu0
    %v112 = vmax.f32 %v106, 0.0
    %v113 = vmax.f32 %v109, 0.0
    %v114 = vld [vmem:[#allocation4] sm:$0xf]
    %v115 = vld [vmem:[#allocation4 + $0x4] sm:$0xf]
    %v116 = vld [vmem:[#allocation4 + $0x8] sm:$0xf]
    %v117 = vld [vmem:[#allocation4 + $0xc] sm:$0xf]
    %v118 = vld [vmem:[#allocation4 + $0x10] sm:$0xf]
    %v119 = vld [vmem:[#allocation4 + $0x14] sm:$0xf]
    %v120 = vld [vmem:[#allocation4 + $0x18] sm:$0xf]
    %v121 = vld [vmem:[#allocation4 + $0x1c] sm:$0xf]
    %v122 = vld [vmem:[#allocation4 + $0x20] sm:$0xf]
    %v123 = vld [vmem:[#allocation4 + $0x24] sm:$0xf]
    %v124 = vld [vmem:[#allocation4 + $0x28] sm:$0xf]
    %v125 = vld [vmem:[#allocation4 + $0x2c] sm:$0xf]
    %v126 = vld [vmem:[#allocation4 + $0x30] sm:$0xf]
    %v127 = vld [vmem:[#allocation4 + $0x34] sm:$0xf]
    %v128 = vld [vmem:[#allocation4 + $0x38] sm:$0xf]
    %v129 = vld [vmem:[#allocation4 + $0x3c] sm:$0xf]
    %v130 = vld [vmem:[%s4] sm:$0x1]
    %v131 = vpack.c.bf16 %v113, %v112
    %v133 = vlaneseq
    %v134 = vshrl.u32 %v133, 7
    %v135 = vsub.s32 0, %v134
    %v136 = vrot.slane %v130, %v135
    %v154 = vunpack.c.l.b16 %v114
    %v155 = vunpack.c.l.b16 %v115
    %v156 = vunpack.c.l.b16 %v116
    %v157 = vunpack.c.l.b16 %v117
    %v158 = vunpack.c.l.b16 %v118
    %v159 = vunpack.c.l.b16 %v119
    %v160 = vunpack.c.l.b16 %v120
    %v161 = vunpack.c.l.b16 %v121
    %v162 = vunpack.c.l.b16 %v122
    %v163 = vunpack.c.l.b16 %v123
    %v164 = vunpack.c.l.b16 %v124
    %v165 = vunpack.c.l.b16 %v125
    %v166 = vunpack.c.l.b16 %v126
    %v167 = vunpack.c.l.b16 %v127
    %v168 = vunpack.c.l.b16 %v128
    %v169 = vunpack.c.l.b16 %v129
    %v170 = vpack.c.b16 %v155, %v154
    %v171 = vpack.c.b16 %v157, %v156
    %v172 = vpack.c.b16 %v159, %v158
    %v173 = vpack.c.b16 %v161, %v160
    %v174 = vpack.c.b16 %v163, %v162
    %v175 = vpack.c.b16 %v165, %v164
    %v176 = vpack.c.b16 %v167, %v166
    %v177 = vpack.c.b16 %v169, %v168
    %186 = vmatprep.subr.bf16.mxu0 0
    %187 = vmatpush1.bf16.msra.mxu0 %v170
    %188 = vmatprep.subr.bf16.mxu0 0
    %189 = vmatpush1.bf16.msra.mxu0 %v171
    %190 = vmatprep.subr.bf16.mxu0 0
    %191 = vmatpush1.bf16.msra.mxu0 %v172
    %192 = vmatprep.subr.bf16.mxu0 0
    %193 = vmatpush1.bf16.msra.mxu0 %v173
    %194 = vmatprep.subr.bf16.mxu0 0
    %195 = vmatpush1.bf16.msra.mxu0 %v174
    %196 = vmatprep.subr.bf16.mxu0 0
    %197 = vmatpush1.bf16.msra.mxu0 %v175
    %198 = vmatprep.subr.bf16.mxu0 0
    %199 = vmatpush1.bf16.msra.mxu0 %v176
    %200 = vmatprep.subr.bf16.mxu0 0
    %201 = vmatpush1.bf16.msra.mxu0 %v177
    %202 = vmatprep.subr.bf16.mxu0 0
    %203 = vmatpush1.bf16.msra.mxu0 0
    %204 = vmatprep.subr.bf16.mxu0 0
    %205 = vmatpush1.bf16.msra.mxu0 0
    %206 = vmatprep.subr.bf16.mxu0 0
    %207 = vmatpush1.bf16.msra.mxu0 0
    %208 = vmatprep.subr.bf16.mxu0 0
    %209 = vmatpush1.bf16.msra.mxu0 0
    %210 = vmatprep.subr.bf16.mxu0 0
    %211 = vmatpush1.bf16.msra.mxu0 0
    %212 = vmatprep.subr.bf16.mxu0 0
    %213 = vmatpush1.bf16.msra.mxu0 0
    %214 = vmatprep.subr.bf16.mxu0 0
    %215 = vmatpush1.bf16.msra.mxu0 0
    %216 = vmatprep.subr.bf16.mxu0 0
    %217 = vmatpush1.bf16.msra.mxu0 0
    %218 = vmatprep.mubr.bf16.mxu0 0
    %219 = vmatmul.mubr.bf16.gmra.mrb[0].mxu0 %v131
    %v220 = vpop.f32.mrb[0].mxu0
    %v221 = vadd.f32 %v136, %v220
    %v222 = vpop.f32.mrb[0].mxu0
    %v223 = vpop.f32.mrb[0].mxu0
    %v224 = vadd.f32 %v136, %v223
    %v225 = vpop.f32.mrb[0].mxu0
    %226 = vdwg.mxu0
    %v227 = vmax.f32 %v221, 0.0
    %v228 = vmax.f32 %v224, 0.0
    %229 = vst [vmem:[%s5] sm:$0xff] %v227
    %230 = vst [vmem:[%s5 + $0x8] sm:$0xff] %v228
    // Predicated region
    $region30: #{fcnet_forward.1} parent=1 // pred_check
      _
    $region31: #{fcnet_forward.1} parent=1 // pred_check_branch
      %232 = sbr.rel (0) target = $region33
    $region32: #{fcnet_forward.1} parent=1 // pred_region
      _
    $region33: #{fcnet_forward.1} parent=1 // pred_fallthru
      _
    // Predicated region
    $region34: #{fcnet_forward.1} parent=1 // pred_check
      _
    $region35: #{fcnet_forward.1} parent=1 // pred_check_branch
      %234 = sbr.rel (0) target = $region37
    $region36: #{fcnet_forward.1} parent=1 // pred_region
      _
    $region37: #{fcnet_forward.1} parent=1 // pred_fallthru
      _
    %235 = vsyncpa [#allocation3], 1
    %236 = vsyncpa [#allocation5], 1

</llo_original>
